<compile_context>
chip_gen: v7x
topology: tpu7x:2x2x1
jax: 0.10.0
libtpu: 0.0.40
codegen_flags: <defaults>
</compile_context>

<pallas_src>
import functools

import jax
import jax.numpy as jnp
import numpy as np
from jax.experimental import pallas as pl
from jax.experimental.pallas import tpu as pltpu


# ---------------------------------------------------------------------------
# Trace-time operator construction (numpy).
# ---------------------------------------------------------------------------
def bilinear_matrix(in_size: int, out_size: int, dtype=np.float32):
    """(out_size, in_size) operator matching F.interpolate(mode='bilinear',
    align_corners=False) along one axis."""
    scale = in_size / out_size
    i = np.arange(out_size, dtype=np.float64)
    src = np.maximum((i + 0.5) * scale - 0.5, 0.0)       # PyTorch clamps negatives
    i0 = np.minimum(np.floor(src).astype(np.int64), in_size - 1)
    i1 = np.minimum(i0 + 1, in_size - 1)
    frac = src - i0
    a = np.zeros((out_size, in_size), dtype=np.float64)
    a[np.arange(out_size), i0] += 1.0 - frac
    a[np.arange(out_size), i1] += frac
    return a.astype(dtype)


def _round_up(x: int, m: int) -> int:
    return ((x + m - 1) // m) * m


def _channel_blocking(cout: int):
    """Return (cout_pad, cblk, ncb).  Pads Cout instead of collapsing cblk."""
    if cout <= 128:
        cout_pad = _round_up(cout, 8)
        return cout_pad, cout_pad, 1
    cout_pad = _round_up(cout, 128)
    return cout_pad, 128, cout_pad // 128


def _pick_ho_block(ho: int, cblk: int, wo: int, out_itemsize: int,
                   budget_bytes: int = 4 << 20) -> int:
    """Largest multiple-of-8 divisor of Ho whose output block fits the budget."""
    cands = [d for d in range(8, ho + 1, 8) if ho % d == 0]
    if not cands:
        return ho
    fit = [d for d in cands if cblk * d * wo * out_itemsize <= budget_bytes]
    return max(fit) if fit else min(cands)


def _vmem_limit(est_bytes: int) -> int:
    # Explicit scoped-VMEM budget: the 16/32 MiB defaults reject larger tiles;
    # 64 MiB is a safe ceiling on all generations (== physical on v7x).
    return int(min(64 << 20, max(32 << 20, int(est_bytes * 1.5))))


def _in_specs(cin, cskip, cblk, hw, rank3):
    if rank3:
        bm = lambda i, c, r: (i, 0, 0)
        cm = lambda i, c, r: (c, 0)
    else:
        bm = lambda i, c: (i, 0, 0)
        cm = lambda i, c: (c, 0)
    return [pl.BlockSpec((1, cin, hw), bm),
            pl.BlockSpec((1, cskip, hw), bm),
            pl.BlockSpec((cblk, cin), cm),
            pl.BlockSpec((cblk, cskip), cm),
            pl.BlockSpec((cblk, 1), cm)]


# ---------------------------------------------------------------------------
# Kernels.
# ---------------------------------------------------------------------------
def _proj_kernel(x_ref, s_ref, wx_ref, ws_ref, b_ref, o_ref):
    """scale == 1: concat + 1x1 conv only (split weights, lanes = H*W)."""
    z = jnp.dot(wx_ref[...], x_ref[0], preferred_element_type=jnp.float32)
    z = z + jnp.dot(ws_ref[...], s_ref[0], preferred_element_type=jnp.float32)
    z = z + b_ref[...]
    o_ref[0] = z.astype(o_ref.dtype)


def _kron_kernel(x_ref, s_ref, wx_ref, ws_ref, b_ref, kt_ref, o_ref):
    """scale > 1, small level (Wo < 128): conv + single dense kron(A_h,A_w)^T
    matmul.  Output stays lane dense: (cblk, Ho*Wo)."""
    z = jnp.dot(wx_ref[...], x_ref[0], preferred_element_type=jnp.float32)
    z = z + jnp.dot(ws_ref[...], s_ref[0], preferred_element_type=jnp.float32)
    z = z + b_ref[...]                                        # (cblk, H*W) f32
    out = jnp.dot(z.astype(kt_ref.dtype), kt_ref[...],
                  preferred_element_type=jnp.float32)         # (cblk, Ho*Wo)
    o_ref[0] = out.astype(o_ref.dtype)


def _make_sep_kernel(h, w, wo, cblk, ho_blk, compute_dtype):
    """scale > 1, large level (Wo >= 128): separable upsample.
    W pass = one big 2-D MXU matmul; H pass tiled over an Ho grid axis."""
    def kernel(x_ref, s_ref, wx_ref, ws_ref, b_ref, awt_ref, ah_ref,
               o_ref, t_ref):
        @pl.when(pl.program_id(2) == 0)
        def _():
            z = jnp.dot(wx_ref[...], x_ref[0],
                        preferred_element_type=jnp.float32)
            z = z + jnp.dot(ws_ref[...], s_ref[0],
                            preferred_element_type=jnp.float32)
            z = z + b_ref[...]                                # (cblk, H*W) f32
            z2 = z.reshape(cblk * h, w).astype(compute_dtype)
            # W pass: M = cblk*H, N = Wo >= 128 lanes -> lane-dense MXU matmul.
            t = jnp.dot(z2, awt_ref[...], preferred_element_type=jnp.float32)
            # Stage ONCE, in the compute dtype, for reuse across Ho tiles.
            t_ref[...] = t.reshape(cblk, h, wo).astype(compute_dtype)

        # H pass for this block of Ho output rows (lanes = Wo).
        # TODO(synk): drop the broadcast once Mosaic lowers an unbatched
        # 2Dx3D dot_general; the batched form is known to lower cleanly.
        ah_b = jnp.broadcast_to(ah_ref[...][None], (cblk, ho_blk, h))
        out = jnp.einsum("cih,chw->ciw", ah_b, t_ref[...],
                         preferred_element_type=jnp.float32)  # (cblk, ho_blk, Wo)
        o_ref[0] = out.astype(o_ref.dtype)
    return kernel


# ---------------------------------------------------------------------------
# Wrapper.
# ---------------------------------------------------------------------------
@functools.partial(jax.jit, static_argnames=("scale", "compute_dtype", "ho_block"))
def feature_pyramid(x_nchw, skip_nchw, weight, bias, *, scale: int,
                    compute_dtype=jnp.bfloat16, ho_block=None):
    """Pallas implementation of FeaturePyramid.forward.

    x_nchw:    (N, Cin,  H, W)
    skip_nchw: (N, Cskip, H, W)
    weight:    (Cout, Cin+Cskip, 1, 1)
    bias:      (Cout,)
    returns:   (N, Cout, H*scale, W*scale)
    """
    n, cin, h, w = x_nchw.shape
    cskip = skip_nchw.shape[1]
    cout = weight.shape[0]
    ho, wo = h * scale, w * scale
    hw = h * w
    out_dtype = x_nchw.dtype
    out_isz = jnp.dtype(out_dtype).itemsize
    cd_isz = jnp.dtype(compute_dtype).itemsize

    # NCHW -> (N, C, H*W): free row-major reshape.  Cast activations to the
    # compute dtype in the wrapper (halves HBM->VMEM DMA on the bf16 path).
    x = x_nchw.reshape(n, cin, hw).astype(compute_dtype)
    s = skip_nchw.reshape(n, cskip, hw).astype(compute_dtype)

    cout_pad, cblk, ncb = _channel_blocking(cout)

    # Split (and zero-pad) the 1x1-conv weight so that
    #   concat([x, skip]) @ W == x @ Wx + skip @ Ws  (no HBM concat).
    wmat = weight.reshape(cout, cin + cskip).astype(jnp.float32)
    bvec = bias.astype(jnp.float32)
    if cout_pad != cout:
        wmat = jnp.pad(wmat, ((0, cout_pad - cout), (0, 0)))
        bvec = jnp.pad(bvec, (0, cout_pad - cout))
    wx = wmat[:, :cin].astype(compute_dtype)                  # (Cout_pad, Cin)
    ws = wmat[:, cin:].astype(compute_dtype)                  # (Cout_pad, Cskip)
    b = bvec.reshape(cout_pad, 1)                             # (Cout_pad, 1) f32

    conv_flops = 2 * n * hw * (cin + cskip) * cout_pad
    in_bytes = cd_isz * (x.size + s.size)
    w_work = 2 * (cblk * (cin + cskip) * cd_isz + cblk * 4)
    act_work = 2 * (cin + cskip) * hw * cd_isz                # x, s double-buffered

    # --------------------------- scale == 1 -------------------------------
    if scale == 1:
        vmem_est = act_work + w_work + 2 * cblk * hw * out_isz + cblk * hw * 4
        out_flat = pl.pallas_call(
            _proj_kernel,
            out_shape=jax.ShapeDtypeStruct((n, cout_pad, hw), out_dtype),
            grid_spec=pltpu.PrefetchScalarGridSpec(
                num_scalar_prefetch=0, grid=(n, ncb),
                in_specs=_in_specs(cin, cskip, cblk, hw, rank3=False),
                out_specs=pl.BlockSpec((1, cblk, hw), lambda i, c: (i, c, 0))),
            compiler_params=pltpu.CompilerParams(
                dimension_semantics=("parallel", "parallel"),
                vmem_limit_bytes=_vmem_limit(vmem_est)),
            cost_estimate=pl.CostEstimate(
                flops=conv_flops, transcendentals=0,
                bytes_accessed=int(in_bytes + out_isz * n * cout_pad * hw)),
        )(x, s, wx, ws, b)
        out = out_flat.reshape(n, cout_pad, h, w)
        return out[:, :cout] if cout_pad != cout else out

    out_bytes = out_isz * n * cout_pad * ho * wo

    # ------------------ small level: dense kron path ----------------------
    use_kron = (wo < 128) and (hw * ho * wo * cd_isz <= (8 << 20))
    if use_kron:
        # out = z @ kron(A_h, A_w)^T, shape (H*W, Ho*Wo): one MXU matmul,
        # lane-dense (Ho*Wo) output, no in-kernel reshapes or scratch.
        kt = jnp.asarray(
            np.kron(bilinear_matrix(h, ho), bilinear_matrix(w, wo)).T,
            dtype=compute_dtype)                              # (H*W, Ho*Wo)
        flops = conv_flops + 2 * n * cout_pad * hw * ho * wo
        vmem_est = (act_work + w_work + 2 * hw * ho * wo * cd_isz
                    + 2 * cblk * ho * wo * out_isz
                    + cblk * hw * 4 + cblk * ho * wo * 4)
        out_flat = pl.pallas_call(
            _kron_kernel,
            out_shape=jax.ShapeDtypeStruct((n, cout_pad, ho * wo), out_dtype),
            grid_spec=pltpu.PrefetchScalarGridSpec(
                num_scalar_prefetch=0, grid=(n, ncb),
                in_specs=_in_specs(cin, cskip, cblk, hw, rank3=False)
                         + [pl.BlockSpec((hw, ho * wo), lambda i, c: (0, 0))],
                out_specs=pl.BlockSpec((1, cblk, ho * wo),
                                       lambda i, c: (i, c, 0))),
            compiler_params=pltpu.CompilerParams(
                dimension_semantics=("parallel", "parallel"),
                vmem_limit_bytes=_vmem_limit(vmem_est)),
            cost_estimate=pl.CostEstimate(
                flops=flops, transcendentals=0,
                bytes_accessed=int(in_bytes + out_bytes)),
        )(x, s, wx, ws, b, kt)
        out = out_flat.reshape(n, cout_pad, ho, wo)
        return out[:, :cout] if cout_pad != cout else out

    # -------------- large level: separable path with Ho tiling ------------
    ho_blk = ho_block if ho_block is not None else _pick_ho_block(ho, cblk, wo,
                                                                  out_isz)
    assert ho % ho_blk == 0 and (ho_blk % 8 == 0 or ho_blk == ho), (ho, ho_blk)
    nhb = ho // ho_blk
    awt = jnp.asarray(bilinear_matrix(w, wo).T, dtype=compute_dtype)  # (W, Wo)
    ah = jnp.asarray(bilinear_matrix(h, ho), dtype=compute_dtype)     # (Ho, H)

    flops = conv_flops + 2 * n * cout_pad * (hw * wo + h * wo * ho)
    vmem_est = (act_work + w_work
                + 2 * (w * wo + ho_blk * h) * cd_isz
                + 2 * cblk * ho_blk * wo * out_isz            # output blocks
                + cblk * h * wo * cd_isz                      # t scratch
                + cblk * hw * 4 + cblk * h * wo * 4           # live f32 values
                + cblk * ho_blk * wo * 4)
    out4 = pl.pallas_call(
        _make_sep_kernel(h, w, wo, cblk, ho_blk, compute_dtype),
        out_shape=jax.ShapeDtypeStruct((n, cout_pad, ho, wo), out_dtype),
        grid_spec=pltpu.PrefetchScalarGridSpec(
            num_scalar_prefetch=0, grid=(n, ncb, nhb),
            in_specs=_in_specs(cin, cskip, cblk, hw, rank3=True)
                     + [pl.BlockSpec((w, wo), lambda i, c, r: (0, 0)),
                        pl.BlockSpec((ho_blk, h), lambda i, c, r: (r, 0))],
            out_specs=pl.BlockSpec((1, cblk, ho_blk, wo),
                                   lambda i, c, r: (i, c, r, 0)),
            scratch_shapes=[pltpu.VMEM((cblk, h, wo), compute_dtype)]),
        compiler_params=pltpu.CompilerParams(
            dimension_semantics=("parallel", "parallel", "arbitrary"),
            vmem_limit_bytes=_vmem_limit(vmem_est)),
        cost_estimate=pl.CostEstimate(
            flops=flops, transcendentals=0,
            bytes_accessed=int(in_bytes + out_bytes)),
    )(x, s, wx, ws, b, awt, ah)
    return out4[:, :cout] if cout_pad != cout else out4


# ---------------------------------------------------------------------------
# Pure-JAX (f32) reference of the same math.
# ---------------------------------------------------------------------------
def feature_pyramid_reference(x_nchw, skip_nchw, weight, bias, *, scale: int):
    n, cin, h, w = x_nchw.shape
    cout = weight.shape[0]
    xc = jnp.concatenate([x_nchw, skip_nchw], axis=1)
    wmat = weight.reshape(cout, -1)
    z = jnp.einsum("oc,nchw->nohw", wmat, xc) + bias[None, :, None, None]
    if scale == 1:
        return z
    a_h = jnp.asarray(bilinear_matrix(h, h * scale), dtype=jnp.float32)
    a_w = jnp.asarray(bilinear_matrix(w, w * scale), dtype=jnp.float32)
    return jnp.einsum("ih,nchw,jw->ncij", a_h, z, a_w)


if __name__ == "__main__":
    def make_inputs(key, n, cin, cskip, cout, h, w):
        kx, ks, kw, kb = jax.random.split(key, 4)
        x = jax.random.normal(kx, (n, cin, h, w), dtype=jnp.float32)
        skip = jax.random.normal(ks, (n, cskip, h, w), dtype=jnp.float32)
        weight = jax.random.normal(kw, (cout, cin + cskip, 1, 1),
                                   dtype=jnp.float32) * 0.1
        bias = jax.random.normal(kb, (cout,), dtype=jnp.float32) * 0.1
        return x, skip, weight, bias

    key = jax.random.PRNGKey(0)

    # --- small level (stage=1 -> scale=2), Wo < 128: dense-kron path -------
    x, skip, weight, bias = make_inputs(key, 2, 4, 4, 8, 16, 16)
    ref = jax.block_until_ready(
        feature_pyramid_reference(x, skip, weight, bias, scale=2))

    out_f32 = jax.block_until_ready(
        feature_pyramid(x, skip, weight, bias, scale=2,
                        compute_dtype=jnp.float32))
    assert out_f32.shape == (2, 8, 32, 32), out_f32.shape
    np.testing.assert_allclose(np.asarray(out_f32), np.asarray(ref),
                               rtol=1e-5, atol=1e-4)

    out_bf16 = jax.block_until_ready(
        feature_pyramid(x, skip, weight, bias, scale=2))
    np.testing.assert_allclose(np.asarray(out_bf16), np.asarray(ref),
                               rtol=3e-2, atol=3e-2)

    # --- scale == 1: conv-only path -----------------------------------------
    out_s1 = jax.block_until_ready(
        feature_pyramid(x, skip, weight, bias, scale=1,
                        compute_dtype=jnp.float32))
    ref_s1 = feature_pyramid_reference(x, skip, weight, bias, scale=1)
    np.testing.assert_allclose(np.asarray(out_s1), np.asarray(ref_s1),
                               rtol=1e-5, atol=1e-4)

    # --- channel padding path (Cout not a multiple of 8) --------------------
    x3, skip3, w3, b3 = make_inputs(jax.random.PRNGKey(0), 1, 4, 4, 6, 16, 16)
    ref3 = feature_pyramid_reference(x3, skip3, w3, b3, scale=2)
    out3 = jax.block_until_ready(
        feature_pyramid(x3, skip3, w3, b3, scale=2, compute_dtype=jnp.float32))
    np.testing.assert_allclose(np.asarray(out3), np.asarray(ref3),
                               rtol=1e-5, atol=1e-4)

    # --- larger level (Wo >= 128): separable path, Ho tiling exercised ------
    x2, skip2, w2, b2 = make_inputs(jax.random.PRNGKey(0), 1, 4, 4, 8, 8, 128)
    ref2 = jax.block_until_ready(
        feature_pyramid_reference(x2, skip2, w2, b2, scale=2))
    out2_f32 = jax.block_until_ready(
        feature_pyramid(x2, skip2, w2, b2, scale=2,
                        compute_dtype=jnp.float32, ho_block=8))
    np.testing.assert_allclose(np.asarray(out2_f32), np.asarray(ref2),
                               rtol=1e-5, atol=1e-4)
    out2_bf16 = jax.block_until_ready(
        feature_pyramid(x2, skip2, w2, b2, scale=2, ho_block=8))
    np.testing.assert_allclose(np.asarray(out2_bf16), np.asarray(ref2),
                               rtol=3e-2, atol=3e-2)

    print("KERNEL_OK")
</pallas_src>

<mosaic_0001>
module attributes {stable_mosaic.version = 11 : i64} {
  func.func @_kron_kernel(%arg0: i32, %arg1: i32, %arg2: memref<1x4x256xf32, #tpu.memory_space<vmem>>, %arg3: memref<1x4x256xf32, #tpu.memory_space<vmem>>, %arg4: memref<8x4xf32, #tpu.memory_space<vmem>>, %arg5: memref<8x4xf32, #tpu.memory_space<vmem>>, %arg6: memref<8x1xf32, #tpu.memory_space<vmem>>, %arg7: memref<256x1024xf32, #tpu.memory_space<vmem>>, %arg8: memref<1x8x1024xf32, #tpu.memory_space<vmem>>) attributes {dimension_semantics = [#tpu.dimension_semantics<parallel>, #tpu.dimension_semantics<parallel>], iteration_bounds = array<i64: 2, 1>, scalar_prefetch = 0 : i64, scratch_operands = 0 : i64, tpu.core_type = #tpu.core_type<tc>, window_params = [{transform_indices = @transform_0, window_bounds = array<i64: 1, 4, 256>}, {transform_indices = @transform_1, window_bounds = array<i64: 1, 4, 256>}, {transform_indices = @transform_2, window_bounds = array<i64: 8, 4>}, {transform_indices = @transform_3, window_bounds = array<i64: 8, 4>}, {transform_indices = @transform_4, window_bounds = array<i64: 8, 1>}, {pipeline_mode = #tpu.pipeline_mode<synchronous>, transform_indices = @transform_5, window_bounds = array<i64: 256, 1024>}, {transform_indices = @transform_6, window_bounds = array<i64: 1, 8, 1024>}]} {
    %c0 = arith.constant 0 : index
    %c0_0 = arith.constant 0 : index
    %0 = vector.load %arg4[%c0, %c0_0] : memref<8x4xf32, #tpu.memory_space<vmem>>, vector<8x4xf32>
    %c0_1 = arith.constant 0 : index
    %c0_2 = arith.constant 0 : index
    %c0_3 = arith.constant 0 : index
    %1 = vector.load %arg2[%c0_1, %c0_2, %c0_3] : memref<1x4x256xf32, #tpu.memory_space<vmem>>, vector<1x4x256xf32>
    %2 = vector.shape_cast %1 : vector<1x4x256xf32> to vector<4x256xf32>
    %cst = arith.constant dense<0.000000e+00> : vector<8x256xf32>
    %3 = tpu.matmul %0, %2, %cst {dimension_numbers = #tpu.dot_dimension_numbers<[1], [0], [0], [1], [0, 0, 1, 1], [], []>} : vector<8x4xf32>, vector<4x256xf32>, vector<8x256xf32> -> vector<8x256xf32>
    %c0_4 = arith.constant 0 : index
    %c0_5 = arith.constant 0 : index
    %4 = vector.load %arg5[%c0_4, %c0_5] : memref<8x4xf32, #tpu.memory_space<vmem>>, vector<8x4xf32>
    %c0_6 = arith.constant 0 : index
    %c0_7 = arith.constant 0 : index
    %c0_8 = arith.constant 0 : index
    %5 = vector.load %arg3[%c0_6, %c0_7, %c0_8] : memref<1x4x256xf32, #tpu.memory_space<vmem>>, vector<1x4x256xf32>
    %6 = vector.shape_cast %5 : vector<1x4x256xf32> to vector<4x256xf32>
    %cst_9 = arith.constant dense<0.000000e+00> : vector<8x256xf32>
    %7 = tpu.matmul %4, %6, %cst_9 {dimension_numbers = #tpu.dot_dimension_numbers<[1], [0], [0], [1], [0, 0, 1, 1], [], []>} : vector<8x4xf32>, vector<4x256xf32>, vector<8x256xf32> -> vector<8x256xf32>
    %8 = arith.addf %3, %7 : vector<8x256xf32>
    %c0_10 = arith.constant 0 : index
    %c0_11 = arith.constant 0 : index
    %9 = vector.load %arg6[%c0_10, %c0_11] : memref<8x1xf32, #tpu.memory_space<vmem>>, vector<8x1xf32>
    %10 = vector.broadcast %9 : vector<8x1xf32> to vector<8x256xf32>
    %11 = arith.addf %8, %10 : vector<8x256xf32>
    %c0_12 = arith.constant 0 : index
    %c0_13 = arith.constant 0 : index
    %12 = vector.load %arg7[%c0_12, %c0_13] : memref<256x1024xf32, #tpu.memory_space<vmem>>, vector<256x1024xf32>
    %cst_14 = arith.constant dense<0.000000e+00> : vector<8x1024xf32>
    %13 = tpu.matmul %11, %12, %cst_14 {dimension_numbers = #tpu.dot_dimension_numbers<[1], [0], [0], [1], [0, 0, 1, 1], [], []>} : vector<8x256xf32>, vector<256x1024xf32>, vector<8x1024xf32> -> vector<8x1024xf32>
    %c0_15 = arith.constant 0 : index
    %c0_16 = arith.constant 0 : index
    %c0_17 = arith.constant 0 : index
    %14 = vector.load %arg8[%c0_15, %c0_16, %c0_17] : memref<1x8x1024xf32, #tpu.memory_space<vmem>>, vector<1x8x1024xf32>
    %15 = vector.shape_cast %14 : vector<1x8x1024xf32> to vector<8x1024xf32>
    %16 = vector.shape_cast %13 : vector<8x1024xf32> to vector<1x8x1024xf32>
    tpu.vector_store %arg8[%c0_15, %c0_16, %c0_17], %16 {strides = array<i32>} : memref<1x8x1024xf32, #tpu.memory_space<vmem>>, vector<1x8x1024xf32>,
    return
  }
  func.func @transform_0(%arg0: i32, %arg1: i32) -> (i32, i32, i32) {
    %c0_i32 = arith.constant 0 : i32
    %c0_i32_0 = arith.constant 0 : i32
    %c0_i32_1 = arith.constant 0 : i32
    return %arg0, %c0_i32, %c0_i32_0 : i32, i32, i32
  }
  func.func @transform_1(%arg0: i32, %arg1: i32) -> (i32, i32, i32) {
    %c0_i32 = arith.constant 0 : i32
    %c0_i32_0 = arith.constant 0 : i32
    %c0_i32_1 = arith.constant 0 : i32
    return %arg0, %c0_i32, %c0_i32_0 : i32, i32, i32
  }
  func.func @transform_2(%arg0: i32, %arg1: i32) -> (i32, i32) {
    %c0_i32 = arith.constant 0 : i32
    %c0_i32_0 = arith.constant 0 : i32
    return %arg1, %c0_i32 : i32, i32
  }
  func.func @transform_3(%arg0: i32, %arg1: i32) -> (i32, i32) {
    %c0_i32 = arith.constant 0 : i32
    %c0_i32_0 = arith.constant 0 : i32
    return %arg1, %c0_i32 : i32, i32
  }
  func.func @transform_4(%arg0: i32, %arg1: i32) -> (i32, i32) {
    %c0_i32 = arith.constant 0 : i32
    %c0_i32_0 = arith.constant 0 : i32
    return %arg1, %c0_i32 : i32, i32
  }
  func.func @transform_5(%arg0: i32, %arg1: i32) -> (i32, i32) {
    %c0_i32 = arith.constant 0 : i32
    %c0_i32_0 = arith.constant 0 : i32
    %c0_i32_1 = arith.constant 0 : i32
    return %c0_i32, %c0_i32_0 : i32, i32
  }
  func.func @transform_6(%arg0: i32, %arg1: i32) -> (i32, i32, i32) {
    %c0_i32 = arith.constant 0 : i32
    %c0_i32_0 = arith.constant 0 : i32
    return %arg0, %arg1, %c0_i32 : i32, i32, i32
  }
}

</mosaic_0001>

<llo_original>
// kernel: feature_pyramid.1
$region0: #{feature_pyramid.1}
  #allocation0 [shape = 'u32[]', space=smem, size = 0x4, offset = 0x4, fixed_abs, tag = 'smem constant byte address 0x4 - core index']
  #allocation1 [shape = 'u32[144,128]{1,0:T(1,128)}', space=vmem, size = 0x12000, scoped, tag = 'internal scratch']
  %s0 = inlined_call_operand.vmem [shape: f32[2,4,256], index: 0, kind: input, shape index: {}]
  %s1 = inlined_call_operand.vmem [shape: f32[2,4,256], index: 1, kind: input, shape index: {}]
  %s2 = inlined_call_operand.vmem [shape: f32[8,4], index: 2, kind: input, shape index: {}]
  %s3 = inlined_call_operand.vmem [shape: f32[8,4], index: 3, kind: input, shape index: {}]
  %s4 = inlined_call_operand.vmem [shape: f32[8,1], index: 4, kind: input, shape index: {}]
  %s5 = inlined_call_operand.hbm [shape: f32[256,1024], index: 5, kind: input, shape index: {}]
  %s6 = inlined_call_operand.vmem [shape: f32[2,8,1024], index: 6, kind: output, shape index: {}]
  %s7 = sld [smem:[#allocation0]]
  $region61: #{feature_pyramid.1} parent=0
    _
  %s9 = ssub.s32 1, %s7
  %s10 = scalar_select 0, %s9, %s7
  $region1: #{feature_pyramid.1} parent=0
    #allocation2 [shape = 'u8[1048576]{0}', space=vmem, size = 0x100000, scoped, tag = 'input window, operand 5, single buffered']
    #allocation3 [shape = 's32[2]{0}', space=sflag, size = 0x8, scoped, tag = 'scoped memory for feature_pyramid.1']
    %11 = vsyncpa [#allocation3], 0
    loop: start=0, step=1, limit=4
    $region2: #{feature_pyramid.1} parent=1 // loop_pre_header
      _
    $region3: #{feature_pyramid.1} parent=1 // loop_header
      %s13 = sphi 0, %s17
      %p14 = scmp.ge.s32.totalorder %s13, 4
      %s20 = sphi 0, %s32
      %s21 = sphi 0, %s28
      %s22 = sphi 0, %s20
      %s23 = sphi 0, %s21
      %s24 = sphi 0, %s22
      %s25 = sphi 0, %s23
      %s35 = sphi 0, %s37
      %s38 = sphi 0, %s35
      %s39 = sphi 0, %s38
      %s55 = sphi 0, %s39
      %s61 = sphi 0, %s63
      %s64 = sphi 0, %s61
      %s65 = sphi 0, %s64
      %s81 = sphi 0, %s65
      %s87 = sphi 0, %s89
      %s90 = sphi 0, %s87
      %s91 = sphi 0, %s90
      %s107 = sphi 0, %s91
      %s113 = sphi 0, %s115
      %s116 = sphi 0, %s113
      %s117 = sphi 0, %s116
      %s133 = sphi 0, %s117
      %s139 = sphi 0, %s141
      %s142 = sphi 0, %s139
      %s143 = sphi 0, %s142
      %s159 = sphi 0, %s143
      %s163 = sphi 0, %s163
      %s165 = sphi 0, %s163
      %s166 = sphi 0, %s165
      %s180 = sphi 0, %s166
      %s188 = sphi 0, %s190
      %s191 = sphi 0, %s188
      %s192 = sphi 0, %s191
      %s208 = sphi 0, %s192
    $region4: #{feature_pyramid.1} parent=1 // loop_header_branch
      %16 = sbr.rel (%p14) target = $region8
    $region5: #{feature_pyramid.1} parent=1 // loop_body
      %s18 = ssub.s32 %s13, 1
      %s19 = ssub.s32 %s13, 2
      %s26 = sadd.s32 1, %s21
      %p27 = scmp.ge.s32.totalorder %s26, 1
      %s28 = scalar_select %p27, 0, %s26
      %s29 = sadd.s32 1, %s20
      %s30 = scalar_select %p27, %s29, %s20
      %p31 = scmp.ge.s32.totalorder %s30, 2
      %s32 = scalar_select %p31, 0, %s30
      %s33 = ssub.s32 %s20, %s32
      %p34 = scmp.eq.s32.totalorder %s33, 0
      %s36 = sadd.s32 %s35, 1
      %s37 = scalar_select %p34, %s35, %s36
      %p40 = pneg %p34
      %p41 = scmp.eq.s32.totalorder %s13, 1
      %p42 = por %p40, %p41
      %p43 = scmp.ne.s32.totalorder %s35, %s38
      %p44 = scmp.eq.s32.totalorder %s13, 0
      %p45 = por %p43, %p44
      %p46 = scmp.ne.s32.totalorder %s35, %s38
      %p47 = scmp.eq.s32.totalorder %s18, 1
      %p48 = por %p46, %p47
      %p49 = scmp.ne.s32.totalorder %s38, %s39
      %p50 = scmp.eq.s32.totalorder %s18, 0
      %p51 = por %p49, %p50
      %p52 = scmp.ne.s32.totalorder %s38, %s39
      %p53 = scmp.eq.s32.totalorder %s19, 1
      %p54 = por %p52, %p53
      %p56 = scmp.ne.s32.totalorder %s39, %s55
      %p57 = scmp.eq.s32.totalorder %s19, 0
      %p58 = por %p56, %p57
      %s59 = ssub.s32 %s20, %s32
      %p60 = scmp.eq.s32.totalorder %s59, 0
      %s62 = sadd.s32 %s61, 1
      %s63 = scalar_select %p60, %s61, %s62
      %p66 = pneg %p60
      %p67 = scmp.eq.s32.totalorder %s13, 1
      %p68 = por %p66, %p67
      %p69 = scmp.ne.s32.totalorder %s61, %s64
      %p70 = scmp.eq.s32.totalorder %s13, 0
      %p71 = por %p69, %p70
      %p72 = scmp.ne.s32.totalorder %s61, %s64
      %p73 = scmp.eq.s32.totalorder %s18, 1
      %p74 = por %p72, %p73
      %p75 = scmp.ne.s32.totalorder %s64, %s65
      %p76 = scmp.eq.s32.totalorder %s18, 0
      %p77 = por %p75, %p76
      %p78 = scmp.ne.s32.totalorder %s64, %s65
      %p79 = scmp.eq.s32.totalorder %s19, 1
      %p80 = por %p78, %p79
      %p82 = scmp.ne.s32.totalorder %s65, %s81
      %p83 = scmp.eq.s32.totalorder %s19, 0
      %p84 = por %p82, %p83
      %s85 = ssub.s32 %s21, %s28
      %p86 = scmp.eq.s32.totalorder %s85, 0
      %s88 = sadd.s32 %s87, 1
      %s89 = scalar_select %p86, %s87, %s88
      %p92 = pneg %p86
      %p93 = scmp.eq.s32.totalorder %s13, 1
      %p94 = por %p92, %p93
      %p95 = scmp.ne.s32.totalorder %s87, %s90
      %p96 = scmp.eq.s32.totalorder %s13, 0
      %p97 = por %p95, %p96
      %p98 = scmp.ne.s32.totalorder %s87, %s90
      %p99 = scmp.eq.s32.totalorder %s18, 1
      %p100 = por %p98, %p99
      %p101 = scmp.ne.s32.totalorder %s90, %s91
      %p102 = scmp.eq.s32.totalorder %s18, 0
      %p103 = por %p101, %p102
      %p104 = scmp.ne.s32.totalorder %s90, %s91
      %p105 = scmp.eq.s32.totalorder %s19, 1
      %p106 = por %p104, %p105
      %p108 = scmp.ne.s32.totalorder %s91, %s107
      %p109 = scmp.eq.s32.totalorder %s19, 0
      %p110 = por %p108, %p109
      %s111 = ssub.s32 %s21, %s28
      %p112 = scmp.eq.s32.totalorder %s111, 0
      %s114 = sadd.s32 %s113, 1
      %s115 = scalar_select %p112, %s113, %s114
      %p118 = pneg %p112
      %p119 = scmp.eq.s32.totalorder %s13, 1
      %p120 = por %p118, %p119
      %p121 = scmp.ne.s32.totalorder %s113, %s116
      %p122 = scmp.eq.s32.totalorder %s13, 0
      %p123 = por %p121, %p122
      %p124 = scmp.ne.s32.totalorder %s113, %s116
      %p125 = scmp.eq.s32.totalorder %s18, 1
      %p126 = por %p124, %p125
      %p127 = scmp.ne.s32.totalorder %s116, %s117
      %p128 = scmp.eq.s32.totalorder %s18, 0
      %p129 = por %p127, %p128
      %p130 = scmp.ne.s32.totalorder %s116, %s117
      %p131 = scmp.eq.s32.totalorder %s19, 1
      %p132 = por %p130, %p131
      %p134 = scmp.ne.s32.totalorder %s117, %s133
      %p135 = scmp.eq.s32.totalorder %s19, 0
      %p136 = por %p134, %p135
      %s137 = ssub.s32 %s21, %s28
      %p138 = scmp.eq.s32.totalorder %s137, 0
      %s140 = sadd.s32 %s139, 1
      %s141 = scalar_select %p138, %s139, %s140
      %p144 = pneg %p138
      %p145 = scmp.eq.s32.totalorder %s13, 1
      %p146 = por %p144, %p145
      %p147 = scmp.ne.s32.totalorder %s139, %s142
      %p148 = scmp.eq.s32.totalorder %s13, 0
      %p149 = por %p147, %p148
      %p150 = scmp.ne.s32.totalorder %s139, %s142
      %p151 = scmp.eq.s32.totalorder %s18, 1
      %p152 = por %p150, %p151
      %p153 = scmp.ne.s32.totalorder %s142, %s143
      %p154 = scmp.eq.s32.totalorder %s18, 0
      %p155 = por %p153, %p154
      %p156 = scmp.ne.s32.totalorder %s142, %s143
      %p157 = scmp.eq.s32.totalorder %s19, 1
      %p158 = por %p156, %p157
      %p160 = scmp.ne.s32.totalorder %s143, %s159
      %p161 = scmp.eq.s32.totalorder %s19, 0
      %p162 = por %p160, %p161
      %s164 = sadd.s32 %s163, 1
      %p167 = scmp.eq.s32.totalorder %s13, 1
      %p168 = scmp.ne.s32.totalorder %s163, %s165
      %p169 = scmp.eq.s32.totalorder %s13, 0
      %p170 = por %p168, %p169
      %p171 = scmp.ne.s32.totalorder %s163, %s165
      %p172 = scmp.eq.s32.totalorder %s18, 1
      %p173 = por %p171, %p172
      %p174 = scmp.ne.s32.totalorder %s165, %s166
      %p175 = scmp.eq.s32.totalorder %s18, 0
      %p176 = por %p174, %p175
      %p177 = scmp.ne.s32.totalorder %s165, %s166
      %p178 = scmp.eq.s32.totalorder %s19, 1
      %p179 = por %p177, %p178
      %p181 = scmp.ne.s32.totalorder %s166, %s180
      %p182 = scmp.eq.s32.totalorder %s19, 0
      %p183 = por %p181, %p182
      %s184 = ssub.s32 %s20, %s32
      %s185 = ssub.s32 %s21, %s28
      %s186 = sor.u32 %s184, %s185
      %p187 = scmp.eq.s32.totalorder %s186, 0
      %s189 = sadd.s32 %s188, 1
      %s190 = scalar_select %p187, %s188, %s189
      %p193 = pneg %p187
      %p194 = scmp.eq.s32.totalorder %s13, 1
      %p195 = por %p193, %p194
      %p196 = scmp.ne.s32.totalorder %s188, %s191
      %p197 = scmp.eq.s32.totalorder %s13, 0
      %p198 = por %p196, %p197
      %p199 = scmp.ne.s32.totalorder %s188, %s191
      %p200 = scmp.eq.s32.totalorder %s18, 1
      %p201 = por %p199, %p200
      %p202 = scmp.ne.s32.totalorder %s191, %s192
      %p203 = scmp.eq.s32.totalorder %s18, 0
      %p204 = por %p202, %p203
      %p205 = scmp.ne.s32.totalorder %s191, %s192
      %p206 = scmp.eq.s32.totalorder %s19, 1
      %p207 = por %p205, %p206
      %p209 = scmp.ne.s32.totalorder %s192, %s208
      %p210 = scmp.eq.s32.totalorder %s19, 0
      %p211 = por %p209, %p210
      %p212 = scmp.le.s32.totalorder 1, %s13
      %p213 = scmp.lt.s32.totalorder %s13, 3
      %p214 = pnand %p212, %p213
      %p215 = pneg %p214
      // Predicated region
      $region9: #{feature_pyramid.1} parent=5 // pred_check
        _
      $region10: #{feature_pyramid.1} parent=5 // pred_check_branch
        %217 = sbr.rel (%p214) target = $region12
      $region11: #{feature_pyramid.1} parent=5 // pred_region
        %s218 = ssub.s32 %s13, 1
        // Predicated region
        $region13: #{feature_pyramid.1} parent=11 // pred_check
          %p219 = pneg %p103
        $region14: #{feature_pyramid.1} parent=11 // pred_check_branch
          %221 = sbr.rel (%p219) target = $region16
        $region15: #{feature_pyramid.1} parent=11 // pred_region
          %p222 = scmp.lt.s32.totalorder %s23, 0
          %s223 = scalar_select %p222, %s23, 0
          %s224 = smul.addr %s223, 8
          %s225 = scalar_lea.vmem %s2, %s224
        $region16: #{feature_pyramid.1} parent=11 // pred_fallthru
          _
        // Predicated region
        $region17: #{feature_pyramid.1} parent=11 // pred_check
          %p226 = pneg %p129
        $region18: #{feature_pyramid.1} parent=11 // pred_check_branch
          %228 = sbr.rel (%p226) target = $region20
        $region19: #{feature_pyramid.1} parent=11 // pred_region
          %p229 = scmp.lt.s32.totalorder %s23, 0
          %s230 = scalar_select %p229, %s23, 0
          %s231 = smul.addr %s230, 8
          %s232 = scalar_lea.vmem %s3, %s231
        $region20: #{feature_pyramid.1} parent=11 // pred_fallthru
          _
        // Predicated region
        $region21: #{feature_pyramid.1} parent=11 // pred_check
          %p233 = pneg %p155
        $region22: #{feature_pyramid.1} parent=11 // pred_check_branch
          %235 = sbr.rel (%p233) target = $region24
        $region23: #{feature_pyramid.1} parent=11 // pred_region
          %p236 = scmp.lt.s32.totalorder %s23, 0
          %s237 = scalar_select %p236, %s23, 0
          %s238 = smul.addr %s237, 8
          %s239 = scalar_lea.vmem %s4, %s238
        $region24: #{feature_pyramid.1} parent=11 // pred_fallthru
          _
        // Predicated region
        $region25: #{feature_pyramid.1} parent=11 // pred_check
          %p240 = pneg %p176
        $region26: #{feature_pyramid.1} parent=11 // pred_check_branch
          %242 = sbr.rel (%p240) target = $region28
        $region27: #{feature_pyramid.1} parent=11 // pred_region
          %s244 = ssub.s32 32768, 32768
          %245 = vsyncadd [#allocation3], %s244
          %s246 = sshll.u32 [#allocation2], 4
          %s247 = int_to_ptr.vmem [resolvable:$true] %s246
          %252 = dma.hbm_to_vmem [thread:$0]  %s5, 32768, %s247, [#allocation3], 1024, 1024, 64
        $region28: #{feature_pyramid.1} parent=11 // pred_fallthru
          _
      $region12: #{feature_pyramid.1} parent=5 // pred_fallthru
        _
      %p253 = scmp.lt.s32.totalorder %s13, 2
      // Predicated region
      $region29: #{feature_pyramid.1} parent=5 // pred_check
        %p254 = pneg %p253
      $region30: #{feature_pyramid.1} parent=5 // pred_check_branch
        %256 = sbr.rel (%p254) target = $region32
      $region31: #{feature_pyramid.1} parent=5 // pred_region
        // Predicated region
        $region33: #{feature_pyramid.1} parent=31 // pred_check
          %p257 = pneg %p45
        $region34: #{feature_pyramid.1} parent=31 // pred_check_branch
          %259 = sbr.rel (%p257) target = $region36
        $region35: #{feature_pyramid.1} parent=31 // pred_region
          %p260 = scmp.lt.s32.totalorder %s20, 1
          %s261 = scalar_select %p260, %s20, 1
          %s262 = smul.addr %s261, 2
          %s263 = smul.addr %s262, 4
          %s264 = scalar_lea.vmem %s0, %s263
        $region36: #{feature_pyramid.1} parent=31 // pred_fallthru
          _
        // Predicated region
        $region37: #{feature_pyramid.1} parent=31 // pred_check
          %p265 = pneg %p71
        $region38: #{feature_pyramid.1} parent=31 // pred_check_branch
          %267 = sbr.rel (%p265) target = $region40
        $region39: #{feature_pyramid.1} parent=31 // pred_region
          %p268 = scmp.lt.s32.totalorder %s20, 1
          %s269 = scalar_select %p268, %s20, 1
          %s270 = smul.addr %s269, 2
          %s271 = smul.addr %s270, 4
          %s272 = scalar_lea.vmem %s1, %s271
        $region40: #{feature_pyramid.1} parent=31 // pred_fallthru
          _
      $region32: #{feature_pyramid.1} parent=5 // pred_fallthru
        _
      %p273 = scmp.le.s32.totalorder 1, %s13
      %p274 = scmp.lt.s32.totalorder %s13, 3
      %p275 = pnand %p273, %p274
      %p276 = pneg %p275
      // Predicated region
      $region41: #{feature_pyramid.1} parent=5 // pred_check
        _
      $region42: #{feature_pyramid.1} parent=5 // pred_check_branch
        %278 = sbr.rel (%p275) target = $region44
      $region43: #{feature_pyramid.1} parent=5 // pred_region
        %s279 = ssub.s32 %s13, 1
        // Predicated region
        $region45: #{feature_pyramid.1} parent=43 // pred_check
          %p280 = pneg %p176
        $region46: #{feature_pyramid.1} parent=43 // pred_check_branch
          %282 = sbr.rel (%p280) target = $region48
        $region47: #{feature_pyramid.1} parent=43 // pred_region
          %283 = dma.done [#allocation3], 32768
        $region48: #{feature_pyramid.1} parent=43 // pred_fallthru
          _
        %p284 = scmp.lt.s32.totalorder %s22, 1
        %s285 = scalar_select %p284, %s22, 1
        %s286 = smul.addr %s285, 2
        %s287 = smul.addr %s286, 4
        %s288 = scalar_lea.vmem %s0, %s287
        %p289 = pneg %p51
        %p290 = pneg %p48
        %p291 = scmp.lt.s32.totalorder %s22, 1
        %s292 = scalar_select %p291, %s22, 1
        %s293 = smul.addr %s292, 2
        %s294 = smul.addr %s293, 4
        %s295 = scalar_lea.vmem %s1, %s294
        %p296 = pneg %p77
        %p297 = pneg %p74
        %p298 = scmp.lt.s32.totalorder %s23, 0
        %s299 = scalar_select %p298, %s23, 0
        %s300 = smul.addr %s299, 8
        %s301 = scalar_lea.vmem %s2, %s300
        %p302 = pneg %p103
        %p303 = pneg %p100
        %p304 = scmp.lt.s32.totalorder %s23, 0
        %s305 = scalar_select %p304, %s23, 0
        %s306 = smul.addr %s305, 8
        %s307 = scalar_lea.vmem %s3, %s306
        %p308 = pneg %p129
        %p309 = pneg %p126
        %p310 = scmp.lt.s32.totalorder %s23, 0
        %s311 = scalar_select %p310, %s23, 0
        %s312 = smul.addr %s311, 8
        %s313 = scalar_lea.vmem %s4, %s312
        %p314 = pneg %p155
        %p315 = pneg %p152
        %p316 = pneg %p176
        %p317 = pneg %p173
        %p318 = pneg %p204
        %p319 = pneg %p201
        %p320 = scmp.lt.s32.totalorder %s22, 1
        %s321 = scalar_select %p320, %s22, 1
        %p322 = scmp.lt.s32.totalorder %s23, 0
        %s323 = scalar_select %p322, %s23, 0
        %s324 = smul.addr %s323, 8
        %s325 = smul.addr %s321, 8
        %s326 = sadd.s32 %s324, %s325
        %s327 = smul.addr %s326, 8
        %s328 = scalar_lea.vmem %s6, %s327
        %p329 = scmp.lt.s32.totalorder %s22, 1
        %s330 = scalar_select %p329, %s22, 1
        %s331 = smul.addr %s330, 2
        %s332 = smul.addr %s331, 4
        %s333 = scalar_lea.vmem %s0, %s332
        %p334 = scmp.lt.s32.totalorder %s22, 1
        %s335 = scalar_select %p334, %s22, 1
        %s336 = smul.addr %s335, 2
        %s337 = smul.addr %s336, 4
        %s338 = scalar_lea.vmem %s1, %s337
        %p339 = scmp.lt.s32.totalorder %s23, 0
        %s340 = scalar_select %p339, %s23, 0
        %s341 = smul.addr %s340, 8
        %s342 = scalar_lea.vmem %s2, %s341
        %p343 = scmp.lt.s32.totalorder %s23, 0
        %s344 = scalar_select %p343, %s23, 0
        %s345 = smul.addr %s344, 8
        %s346 = scalar_lea.vmem %s3, %s345
        %p347 = scmp.lt.s32.totalorder %s23, 0
        %s348 = scalar_select %p347, %s23, 0
        %s349 = smul.addr %s348, 8
        %s350 = scalar_lea.vmem %s4, %s349
        %p351 = scmp.lt.s32.totalorder %s22, 1
        %s352 = scalar_select %p351, %s22, 1
        %p353 = scmp.lt.s32.totalorder %s23, 0
        %s354 = scalar_select %p353, %s23, 0
        %s355 = smul.addr %s354, 8
        %s356 = smul.addr %s352, 8
        %s357 = sadd.s32 %s355, %s356
        %s358 = smul.addr %s357, 8
        %s359 = scalar_lea.vmem %s6, %s358
        %v360 = vld [vmem:[%s342] sm:$0xff]
        %v361 = vld [vmem:[%s333] sm:$0xff]
        %v362 = vld [vmem:[%s346] sm:$0xff]
        %v363 = vld [vmem:[%s338] sm:$0xff]
        %v365 = vcombine.high %v363, %v363
        %vm366 = vcmask 31744
        %v368 = vsel %vm366, %v362, 0
        %vm370 = vcmask 1043456
        %v371 = vsel %vm370, %v363, 0
        %v373 = vsel %vm370, %v365, 0
        %375 = vmatprep.subr.mxu0 %v373
        %376 = vmatpush1.msra.mxu0 %v371
        %377 = vmatprep.subr.mxu0 0.0
        %378 = vmatpush1.msra.mxu0 0.0
        %379 = vmatprep.subr.mxu0 0.0
        %380 = vmatpush1.msra.mxu0 0.0
        %381 = vmatprep.subr.mxu0 0.0
        %382 = vmatpush1.msra.mxu0 0.0
        %383 = vmatprep.subr.mxu0 0.0
        %384 = vmatpush1.msra.mxu0 0.0
        %385 = vmatprep.subr.mxu0 0.0
        %386 = vmatpush1.msra.mxu0 0.0
        %387 = vmatprep.subr.mxu0 0.0
        %388 = vmatpush1.msra.mxu0 0.0
        %389 = vmatprep.subr.mxu0 0.0
        %390 = vmatpush1.msra.mxu0 0.0
        %391 = vmatprep.subr.mxu0 0.0
        %392 = vmatpush1.msra.mxu0 0.0
        %393 = vmatprep.subr.mxu0 0.0
        %394 = vmatpush1.msra.mxu0 0.0
        %395 = vmatprep.subr.mxu0 0.0
        %396 = vmatpush1.msra.mxu0 0.0
        %397 = vmatprep.subr.mxu0 0.0
        %398 = vmatpush1.msra.mxu0 0.0
        %399 = vmatprep.subr.mxu0 0.0
        %400 = vmatpush1.msra.mxu0 0.0
        %401 = vmatprep.subr.mxu0 0.0
        %402 = vmatpush1.msra.mxu0 0.0
        %403 = vmatprep.subr.mxu0 0.0
        %404 = vmatpush1.msra.mxu0 0.0
        %405 = vmatprep.subr.mxu0 0.0
        %406 = vmatpush1.msra.mxu0 0.0
        %407 = vmatprep.subr.mxu0 0.0
        %408 = vmatpush1.msra.mxu0 0.0
        %409 = vmatprep.subr.mxu0 0.0
        %410 = vmatpush1.msra.mxu0 0.0
        %411 = vmatprep.subr.mxu0 0.0
        %412 = vmatpush1.msra.mxu0 0.0
        %413 = vmatprep.subr.mxu0 0.0
        %414 = vmatpush1.msra.mxu0 0.0
        %415 = vmatprep.subr.mxu0 0.0
        %416 = vmatpush1.msra.mxu0 0.0
        %417 = vmatprep.subr.mxu0 0.0
        %418 = vmatpush1.msra.mxu0 0.0
        %419 = vmatprep.subr.mxu0 0.0
        %420 = vmatpush1.msra.mxu0 0.0
        %421 = vmatprep.subr.mxu0 0.0
        %422 = vmatpush1.msra.mxu0 0.0
        %423 = vmatprep.subr.mxu0 0.0
        %424 = vmatpush1.msra.mxu0 0.0
        %425 = vmatprep.subr.mxu0 0.0
        %426 = vmatpush1.msra.mxu0 0.0
        %427 = vmatprep.subr.mxu0 0.0
        %428 = vmatpush1.msra.mxu0 0.0
        %429 = vmatprep.subr.mxu0 0.0
        %430 = vmatpush1.msra.mxu0 0.0
        %431 = vmatprep.subr.mxu0 0.0
        %432 = vmatpush1.msra.mxu0 0.0
        %433 = vmatprep.subr.mxu0 0.0
        %434 = vmatpush1.msra.mxu0 0.0
        %435 = vmatprep.subr.mxu0 0.0
        %436 = vmatpush1.msra.mxu0 0.0
        %437 = vmatprep.subr.mxu0 0.0
        %438 = vmatpush1.msra.mxu0 0.0
        %439 = vmatprep.mubr.f32.mxu0 0.0
        %440 = vmatmul.mubr.f32.gmra.mrb[0].mxu0 %v368
        %v441 = vpop.f32.mrb[0].mxu0
        %v442 = vadd.f32 0.0, %v441
        %v443 = vpop.f32.mrb[0].mxu0
        %v444 = vadd.f32 0.0, %v443
        %445 = vdwg.mxu0
        %v447 = vcombine.high %v361, %v361
        %v449 = vsel %vm366, %v360, 0
        %v451 = vsel %vm370, %v361, 0
        %v453 = vsel %vm370, %v447, 0
        %455 = vmatprep.subr.mxu0 %v453
        %456 = vmatpush1.msra.mxu0 %v451
        %457 = vmatprep.subr.mxu0 0.0
        %458 = vmatpush1.msra.mxu0 0.0
        %459 = vmatprep.subr.mxu0 0.0
        %460 = vmatpush1.msra.mxu0 0.0
        %461 = vmatprep.subr.mxu0 0.0
        %462 = vmatpush1.msra.mxu0 0.0
        %463 = vmatprep.subr.mxu0 0.0
        %464 = vmatpush1.msra.mxu0 0.0
        %465 = vmatprep.subr.mxu0 0.0
        %466 = vmatpush1.msra.mxu0 0.0
        %467 = vmatprep.subr.mxu0 0.0
        %468 = vmatpush1.msra.mxu0 0.0
        %469 = vmatprep.subr.mxu0 0.0
        %470 = vmatpush1.msra.mxu0 0.0
        %471 = vmatprep.subr.mxu0 0.0
        %472 = vmatpush1.msra.mxu0 0.0
        %473 = vmatprep.subr.mxu0 0.0
        %474 = vmatpush1.msra.mxu0 0.0
        %475 = vmatprep.subr.mxu0 0.0
        %476 = vmatpush1.msra.mxu0 0.0
        %477 = vmatprep.subr.mxu0 0.0
        %478 = vmatpush1.msra.mxu0 0.0
        %479 = vmatprep.subr.mxu0 0.0
        %480 = vmatpush1.msra.mxu0 0.0
        %481 = vmatprep.subr.mxu0 0.0
        %482 = vmatpush1.msra.mxu0 0.0
        %483 = vmatprep.subr.mxu0 0.0
        %484 = vmatpush1.msra.mxu0 0.0
        %485 = vmatprep.subr.mxu0 0.0
        %486 = vmatpush1.msra.mxu0 0.0
        %487 = vmatprep.subr.mxu0 0.0
        %488 = vmatpush1.msra.mxu0 0.0
        %489 = vmatprep.subr.mxu0 0.0
        %490 = vmatpush1.msra.mxu0 0.0
        %491 = vmatprep.subr.mxu0 0.0
        %492 = vmatpush1.msra.mxu0 0.0
        %493 = vmatprep.subr.mxu0 0.0
        %494 = vmatpush1.msra.mxu0 0.0
        %495 = vmatprep.subr.mxu0 0.0
        %496 = vmatpush1.msra.mxu0 0.0
        %497 = vmatprep.subr.mxu0 0.0
        %498 = vmatpush1.msra.mxu0 0.0
        %499 = vmatprep.subr.mxu0 0.0
        %500 = vmatpush1.msra.mxu0 0.0
        %501 = vmatprep.subr.mxu0 0.0
        %502 = vmatpush1.msra.mxu0 0.0
        %503 = vmatprep.subr.mxu0 0.0
        %504 = vmatpush1.msra.mxu0 0.0
        %505 = vmatprep.subr.mxu0 0.0
        %506 = vmatpush1.msra.mxu0 0.0
        %507 = vmatprep.subr.mxu0 0.0
        %508 = vmatpush1.msra.mxu0 0.0
        %509 = vmatprep.subr.mxu0 0.0
        %510 = vmatpush1.msra.mxu0 0.0
        %511 = vmatprep.subr.mxu0 0.0
        %512 = vmatpush1.msra.mxu0 0.0
        %513 = vmatprep.subr.mxu0 0.0
        %514 = vmatpush1.msra.mxu0 0.0
        %515 = vmatprep.subr.mxu0 0.0
        %516 = vmatpush1.msra.mxu0 0.0
        %517 = vmatprep.subr.mxu0 0.0
        %518 = vmatpush1.msra.mxu0 0.0
        %519 = vmatprep.mubr.f32.mxu0 0.0
        %520 = vmatmul.mubr.f32.gmra.mrb[0].mxu0 %v449
        %v521 = vpop.f32.mrb[0].mxu0
        %v522 = vadd.f32 %v442, %v521
        %v523 = vpop.f32.mrb[0].mxu0
        %v524 = vadd.f32 %v444, %v523
        %525 = vdwg.mxu0
        %v526 = vld [vmem:[%s350] sm:$0xff]
        %528 = vset.pattern.permute.xlu0 0
        %529 = vperm.xlu0 %528, %v526
        %v530 = vpop.permute.xlu0 %529
        %v532 = vadd.f32 %v522, %v530
        %v533 = vadd.f32 %v524, %v530
        %v534 = vld [vmem:[#allocation2] sm:$0xff]
        %v535 = vld [vmem:[#allocation2 + $0x8] sm:$0xff]
        %v536 = vld [vmem:[#allocation2 + $0x10] sm:$0xff]
        %v537 = vld [vmem:[#allocation2 + $0x18] sm:$0xff]
        %v538 = vld [vmem:[#allocation2 + $0x20] sm:$0xff]
        %v539 = vld [vmem:[#allocation2 + $0x28] sm:$0xff]
        %v540 = vld [vmem:[#allocation2 + $0x30] sm:$0xff]
        %v541 = vld [vmem:[#allocation2 + $0x38] sm:$0xff]
        %v542 = vld [vmem:[#allocation2 + $0x40] sm:$0xff]
        %v543 = vld [vmem:[#allocation2 + $0x48] sm:$0xff]
        %v544 = vld [vmem:[#allocation2 + $0x50] sm:$0xff]
        %v545 = vld [vmem:[#allocation2 + $0x58] sm:$0xff]
        %v546 = vld [vmem:[#allocation2 + $0x60] sm:$0xff]
        %v547 = vld [vmem:[#allocation2 + $0x68] sm:$0xff]
        %v548 = vld [vmem:[#allocation2 + $0x70] sm:$0xff]
        %v549 = vld [vmem:[#allocation2 + $0x78] sm:$0xff]
        %v550 = vld [vmem:[#allocation2 + $0x80] sm:$0xff]
        %v551 = vld [vmem:[#allocation2 + $0x88] sm:$0xff]
        %v552 = vld [vmem:[#allocation2 + $0x90] sm:$0xff]
        %v553 = vld [vmem:[#allocation2 + $0x98] sm:$0xff]
        %v554 = vld [vmem:[#allocation2 + $0xa0] sm:$0xff]
        %v555 = vld [vmem:[#allocation2 + $0xa8] sm:$0xff]
        %v556 = vld [vmem:[#allocation2 + $0xb0] sm:$0xff]
        %v557 = vld [vmem:[#allocation2 + $0xb8] sm:$0xff]
        %v558 = vld [vmem:[#allocation2 + $0xc0] sm:$0xff]
        %v559 = vld [vmem:[#allocation2 + $0xc8] sm:$0xff]
        %v560 = vld [vmem:[#allocation2 + $0xd0] sm:$0xff]
        %v561 = vld [vmem:[#allocation2 + $0xd8] sm:$0xff]
        %v562 = vld [vmem:[#allocation2 + $0xe0] sm:$0xff]
        %v563 = vld [vmem:[#allocation2 + $0xe8] sm:$0xff]
        %v564 = vld [vmem:[#allocation2 + $0xf0] sm:$0xff]
        %v565 = vld [vmem:[#allocation2 + $0xf8] sm:$0xff]
        %v566 = vld [vmem:[#allocation2 + $0x100] sm:$0xff]
        %v567 = vld [vmem:[#allocation2 + $0x108] sm:$0xff]
        %v568 = vld [vmem:[#allocation2 + $0x110] sm:$0xff]
        %v569 = vld [vmem:[#allocation2 + $0x118] sm:$0xff]
        %v570 = vld [vmem:[#allocation2 + $0x120] sm:$0xff]
        %v571 = vld [vmem:[#allocation2 + $0x128] sm:$0xff]
        %v572 = vld [vmem:[#allocation2 + $0x130] sm:$0xff]
        %v573 = vld [vmem:[#allocation2 + $0x138] sm:$0xff]
        %v574 = vld [vmem:[#allocation2 + $0x140] sm:$0xff]
        %v575 = vld [vmem:[#allocation2 + $0x148] sm:$0xff]
        %v576 = vld [vmem:[#allocation2 + $0x150] sm:$0xff]
        %v577 = vld [vmem:[#allocation2 + $0x158] sm:$0xff]
        %v578 = vld [vmem:[#allocation2 + $0x160] sm:$0xff]
        %v579 = vld [vmem:[#allocation2 + $0x168] sm:$0xff]
        %v580 = vld [vmem:[#allocation2 + $0x170] sm:$0xff]
        %v581 = vld [vmem:[#allocation2 + $0x178] sm:$0xff]
        %v582 = vld [vmem:[#allocation2 + $0x180] sm:$0xff]
        %v583 = vld [vmem:[#allocation2 + $0x188] sm:$0xff]
        %v584 = vld [vmem:[#allocation2 + $0x190] sm:$0xff]
        %v585 = vld [vmem:[#allocation2 + $0x198] sm:$0xff]
        %v586 = vld [vmem:[#allocation2 + $0x1a0] sm:$0xff]
        %v587 = vld [vmem:[#allocation2 + $0x1a8] sm:$0xff]
        %v588 = vld [vmem:[#allocation2 + $0x1b0] sm:$0xff]
        %v589 = vld [vmem:[#allocation2 + $0x1b8] sm:$0xff]
        %v590 = vld [vmem:[#allocation2 + $0x1c0] sm:$0xff]
        %v591 = vld [vmem:[#allocation2 + $0x1c8] sm:$0xff]
        %v592 = vld [vmem:[#allocation2 + $0x1d0] sm:$0xff]
        %v593 = vld [vmem:[#allocation2 + $0x1d8] sm:$0xff]
        %v594 = vld [vmem:[#allocation2 + $0x1e0] sm:$0xff]
        %v595 = vld [vmem:[#allocation2 + $0x1e8] sm:$0xff]
        %v596 = vld [vmem:[#allocation2 + $0x1f0] sm:$0xff]
        %v597 = vld [vmem:[#allocation2 + $0x1f8] sm:$0xff]
        %v598 = vld [vmem:[#allocation2 + $0x200] sm:$0xff]
        %v599 = vld [vmem:[#allocation2 + $0x208] sm:$0xff]
        %v600 = vld [vmem:[#allocation2 + $0x210] sm:$0xff]
        %v601 = vld [vmem:[#allocation2 + $0x218] sm:$0xff]
        %v602 = vld [vmem:[#allocation2 + $0x220] sm:$0xff]
        %v603 = vld [vmem:[#allocation2 + $0x228] sm:$0xff]
        %v604 = vld [vmem:[#allocation2 + $0x230] sm:$0xff]
        %v605 = vld [vmem:[#allocation2 + $0x238] sm:$0xff]
        %v606 = vld [vmem:[#allocation2 + $0x240] sm:$0xff]
        %v607 = vld [vmem:[#allocation2 + $0x248] sm:$0xff]
        %v608 = vld [vmem:[#allocation2 + $0x250] sm:$0xff]
        %v609 = vld [vmem:[#allocation2 + $0x258] sm:$0xff]
        %v610 = vld [vmem:[#allocation2 + $0x260] sm:$0xff]
        %v611 = vld [vmem:[#allocation2 + $0x268] sm:$0xff]
        %v612 = vld [vmem:[#allocation2 + $0x270] sm:$0xff]
        %v613 = vld [vmem:[#allocation2 + $0x278] sm:$0xff]
        %v614 = vld [vmem:[#allocation2 + $0x280] sm:$0xff]
        %v615 = vld [vmem:[#allocation2 + $0x288] sm:$0xff]
        %v616 = vld [vmem:[#allocation2 + $0x290] sm:$0xff]
        %v617 = vld [vmem:[#allocation2 + $0x298] sm:$0xff]
        %v618 = vld [vmem:[#allocation2 + $0x2a0] sm:$0xff]
        %v619 = vld [vmem:[#allocation2 + $0x2a8] sm:$0xff]
        %v620 = vld [vmem:[#allocation2 + $0x2b0] sm:$0xff]
        %v621 = vld [vmem:[#allocation2 + $0x2b8] sm:$0xff]
        %v622 = vld [vmem:[#allocation2 + $0x2c0] sm:$0xff]
        %v623 = vld [vmem:[#allocation2 + $0x2c8] sm:$0xff]
        %v624 = vld [vmem:[#allocation2 + $0x2d0] sm:$0xff]
        %v625 = vld [vmem:[#allocation2 + $0x2d8] sm:$0xff]
        %v626 = vld [vmem:[#allocation2 + $0x2e0] sm:$0xff]
        %v627 = vld [vmem:[#allocation2 + $0x2e8] sm:$0xff]
        %v628 = vld [vmem:[#allocation2 + $0x2f0] sm:$0xff]
        %v629 = vld [vmem:[#allocation2 + $0x2f8] sm:$0xff]
        %v630 = vld [vmem:[#allocation2 + $0x300] sm:$0xff]
        %v631 = vld [vmem:[#allocation2 + $0x308] sm:$0xff]
        %v632 = vld [vmem:[#allocation2 + $0x310] sm:$0xff]
        %v633 = vld [vmem:[#allocation2 + $0x318] sm:$0xff]
        %v634 = vld [vmem:[#allocation2 + $0x320] sm:$0xff]
        %v635 = vld [vmem:[#allocation2 + $0x328] sm:$0xff]
        %v636 = vld [vmem:[#allocation2 + $0x330] sm:$0xff]
        %v637 = vld [vmem:[#allocation2 + $0x338] sm:$0xff]
        %v638 = vld [vmem:[#allocation2 + $0x340] sm:$0xff]
        %v639 = vld [vmem:[#allocation2 + $0x348] sm:$0xff]
        %v640 = vld [vmem:[#allocation2 + $0x350] sm:$0xff]
        %v641 = vld [vmem:[#allocation2 + $0x358] sm:$0xff]
        %v642 = vld [vmem:[#allocation2 + $0x360] sm:$0xff]
        %v643 = vld [vmem:[#allocation2 + $0x368] sm:$0xff]
        %v644 = vld [vmem:[#allocation2 + $0x370] sm:$0xff]
        %v645 = vld [vmem:[#allocation2 + $0x378] sm:$0xff]
        %v646 = vld [vmem:[#allocation2 + $0x380] sm:$0xff]
        %v647 = vld [vmem:[#allocation2 + $0x388] sm:$0xff]
        %v648 = vld [vmem:[#allocation2 + $0x390] sm:$0xff]
        %v649 = vld [vmem:[#allocation2 + $0x398] sm:$0xff]
        %v650 = vld [vmem:[#allocation2 + $0x3a0] sm:$0xff]
        %v651 = vld [vmem:[#allocation2 + $0x3a8] sm:$0xff]
        %v652 = vld [vmem:[#allocation2 + $0x3b0] sm:$0xff]
        %v653 = vld [vmem:[#allocation2 + $0x3b8] sm:$0xff]
        %v654 = vld [vmem:[#allocation2 + $0x3c0] sm:$0xff]
        %v655 = vld [vmem:[#allocation2 + $0x3c8] sm:$0xff]
        %v656 = vld [vmem:[#allocation2 + $0x3d0] sm:$0xff]
        %v657 = vld [vmem:[#allocation2 + $0x3d8] sm:$0xff]
        %v658 = vld [vmem:[#allocation2 + $0x3e0] sm:$0xff]
        %v659 = vld [vmem:[#allocation2 + $0x3e8] sm:$0xff]
        %v660 = vld [vmem:[#allocation2 + $0x3f0] sm:$0xff]
        %v661 = vld [vmem:[#allocation2 + $0x3f8] sm:$0xff]
        %v662 = vld [vmem:[#allocation2 + $0x400] sm:$0xff]
        %v663 = vld [vmem:[#allocation2 + $0x408] sm:$0xff]
        %v664 = vld [vmem:[#allocation2 + $0x410] sm:$0xff]
        %v665 = vld [vmem:[#allocation2 + $0x418] sm:$0xff]
        %v666 = vld [vmem:[#allocation2 + $0x420] sm:$0xff]
        %v667 = vld [vmem:[#allocation2 + $0x428] sm:$0xff]
        %v668 = vld [vmem:[#allocation2 + $0x430] sm:$0xff]
        %v669 = vld [vmem:[#allocation2 + $0x438] sm:$0xff]
        %v670 = vld [vmem:[#allocation2 + $0x440] sm:$0xff]
        %v671 = vld [vmem:[#allocation2 + $0x448] sm:$0xff]
        %v672 = vld [vmem:[#allocation2 + $0x450] sm:$0xff]
        %v673 = vld [vmem:[#allocation2 + $0x458] sm:$0xff]
        %v674 = vld [vmem:[#allocation2 + $0x460] sm:$0xff]
        %v675 = vld [vmem:[#allocation2 + $0x468] sm:$0xff]
        %v676 = vld [vmem:[#allocation2 + $0x470] sm:$0xff]
        %v677 = vld [vmem:[#allocation2 + $0x478] sm:$0xff]
        %v678 = vld [vmem:[#allocation2 + $0x480] sm:$0xff]
        %v679 = vld [vmem:[#allocation2 + $0x488] sm:$0xff]
        %v680 = vld [vmem:[#allocation2 + $0x490] sm:$0xff]
        %v681 = vld [vmem:[#allocation2 + $0x498] sm:$0xff]
        %v682 = vld [vmem:[#allocation2 + $0x4a0] sm:$0xff]
        %v683 = vld [vmem:[#allocation2 + $0x4a8] sm:$0xff]
        %v684 = vld [vmem:[#allocation2 + $0x4b0] sm:$0xff]
        %v685 = vld [vmem:[#allocation2 + $0x4b8] sm:$0xff]
        %v686 = vld [vmem:[#allocation2 + $0x4c0] sm:$0xff]
        %v687 = vld [vmem:[#allocation2 + $0x4c8] sm:$0xff]
        %v688 = vld [vmem:[#allocation2 + $0x4d0] sm:$0xff]
        %v689 = vld [vmem:[#allocation2 + $0x4d8] sm:$0xff]
        %v690 = vld [vmem:[#allocation2 + $0x4e0] sm:$0xff]
        %v691 = vld [vmem:[#allocation2 + $0x4e8] sm:$0xff]
        %v692 = vld [vmem:[#allocation2 + $0x4f0] sm:$0xff]
        %v693 = vld [vmem:[#allocation2 + $0x4f8] sm:$0xff]
        %v694 = vld [vmem:[#allocation2 + $0x500] sm:$0xff]
        %v695 = vld [vmem:[#allocation2 + $0x508] sm:$0xff]
        %v696 = vld [vmem:[#allocation2 + $0x510] sm:$0xff]
        %v697 = vld [vmem:[#allocation2 + $0x518] sm:$0xff]
        %v698 = vld [vmem:[#allocation2 + $0x520] sm:$0xff]
        %v699 = vld [vmem:[#allocation2 + $0x528] sm:$0xff]
        %v700 = vld [vmem:[#allocation2 + $0x530] sm:$0xff]
        %v701 = vld [vmem:[#allocation2 + $0x538] sm:$0xff]
        %v702 = vld [vmem:[#allocation2 + $0x540] sm:$0xff]
        %v703 = vld [vmem:[#allocation2 + $0x548] sm:$0xff]
        %v704 = vld [vmem:[#allocation2 + $0x550] sm:$0xff]
        %v705 = vld [vmem:[#allocation2 + $0x558] sm:$0xff]
        %v706 = vld [vmem:[#allocation2 + $0x560] sm:$0xff]
        %v707 = vld [vmem:[#allocation2 + $0x568] sm:$0xff]
        %v708 = vld [vmem:[#allocation2 + $0x570] sm:$0xff]
        %v709 = vld [vmem:[#allocation2 + $0x578] sm:$0xff]
        %v710 = vld [vmem:[#allocation2 + $0x580] sm:$0xff]
        %v711 = vld [vmem:[#allocation2 + $0x588] sm:$0xff]
        %v712 = vld [vmem:[#allocation2 + $0x590] sm:$0xff]
        %v713 = vld [vmem:[#allocation2 + $0x598] sm:$0xff]
        %v714 = vld [vmem:[#allocation2 + $0x5a0] sm:$0xff]
        %v715 = vld [vmem:[#allocation2 + $0x5a8] sm:$0xff]
        %v716 = vld [vmem:[#allocation2 + $0x5b0] sm:$0xff]
        %v717 = vld [vmem:[#allocation2 + $0x5b8] sm:$0xff]
        %v718 = vld [vmem:[#allocation2 + $0x5c0] sm:$0xff]
        %v719 = vld [vmem:[#allocation2 + $0x5c8] sm:$0xff]
        %v720 = vld [vmem:[#allocation2 + $0x5d0] sm:$0xff]
        %v721 = vld [vmem:[#allocation2 + $0x5d8] sm:$0xff]
        %v722 = vld [vmem:[#allocation2 + $0x5e0] sm:$0xff]
        %v723 = vld [vmem:[#allocation2 + $0x5e8] sm:$0xff]
        %v724 = vld [vmem:[#allocation2 + $0x5f0] sm:$0xff]
        %v725 = vld [vmem:[#allocation2 + $0x5f8] sm:$0xff]
        %v726 = vld [vmem:[#allocation2 + $0x600] sm:$0xff]
        %v727 = vld [vmem:[#allocation2 + $0x608] sm:$0xff]
        %v728 = vld [vmem:[#allocation2 + $0x610] sm:$0xff]
        %v729 = vld [vmem:[#allocation2 + $0x618] sm:$0xff]
        %v730 = vld [vmem:[#allocation2 + $0x620] sm:$0xff]
        %v731 = vld [vmem:[#allocation2 + $0x628] sm:$0xff]
        %v732 = vld [vmem:[#allocation2 + $0x630] sm:$0xff]
        %v733 = vld [vmem:[#allocation2 + $0x638] sm:$0xff]
        %v734 = vld [vmem:[#allocation2 + $0x640] sm:$0xff]
        %v735 = vld [vmem:[#allocation2 + $0x648] sm:$0xff]
        %v736 = vld [vmem:[#allocation2 + $0x650] sm:$0xff]
        %v737 = vld [vmem:[#allocation2 + $0x658] sm:$0xff]
        %v738 = vld [vmem:[#allocation2 + $0x660] sm:$0xff]
        %v739 = vld [vmem:[#allocation2 + $0x668] sm:$0xff]
        %v740 = vld [vmem:[#allocation2 + $0x670] sm:$0xff]
        %v741 = vld [vmem:[#allocation2 + $0x678] sm:$0xff]
        %v742 = vld [vmem:[#allocation2 + $0x680] sm:$0xff]
        %v743 = vld [vmem:[#allocation2 + $0x688] sm:$0xff]
        %v744 = vld [vmem:[#allocation2 + $0x690] sm:$0xff]
        %v745 = vld [vmem:[#allocation2 + $0x698] sm:$0xff]
        %v746 = vld [vmem:[#allocation2 + $0x6a0] sm:$0xff]
        %v747 = vld [vmem:[#allocation2 + $0x6a8] sm:$0xff]
        %v748 = vld [vmem:[#allocation2 + $0x6b0] sm:$0xff]
        %v749 = vld [vmem:[#allocation2 + $0x6b8] sm:$0xff]
        %v750 = vld [vmem:[#allocation2 + $0x6c0] sm:$0xff]
        %v751 = vld [vmem:[#allocation2 + $0x6c8] sm:$0xff]
        %v752 = vld [vmem:[#allocation2 + $0x6d0] sm:$0xff]
        %v753 = vld [vmem:[#allocation2 + $0x6d8] sm:$0xff]
        %v754 = vld [vmem:[#allocation2 + $0x6e0] sm:$0xff]
        %v755 = vld [vmem:[#allocation2 + $0x6e8] sm:$0xff]
        %v756 = vld [vmem:[#allocation2 + $0x6f0] sm:$0xff]
        %v757 = vld [vmem:[#allocation2 + $0x6f8] sm:$0xff]
        %v758 = vld [vmem:[#allocation2 + $0x700] sm:$0xff]
        %v759 = vld [vmem:[#allocation2 + $0x708] sm:$0xff]
        %v760 = vld [vmem:[#allocation2 + $0x710] sm:$0xff]
        %v761 = vld [vmem:[#allocation2 + $0x718] sm:$0xff]
        %v762 = vld [vmem:[#allocation2 + $0x720] sm:$0xff]
        %v763 = vld [vmem:[#allocation2 + $0x728] sm:$0xff]
        %v764 = vld [vmem:[#allocation2 + $0x730] sm:$0xff]
        %v765 = vld [vmem:[#allocation2 + $0x738] sm:$0xff]
        %v766 = vld [vmem:[#allocation2 + $0x740] sm:$0xff]
        %v767 = vld [vmem:[#allocation2 + $0x748] sm:$0xff]
        %v768 = vld [vmem:[#allocation2 + $0x750] sm:$0xff]
        %v769 = vld [vmem:[#allocation2 + $0x758] sm:$0xff]
        %v770 = vld [vmem:[#allocation2 + $0x760] sm:$0xff]
        %v771 = vld [vmem:[#allocation2 + $0x768] sm:$0xff]
        %v772 = vld [vmem:[#allocation2 + $0x770] sm:$0xff]
        %v773 = vld [vmem:[#allocation2 + $0x778] sm:$0xff]
        %v774 = vld [vmem:[#allocation2 + $0x780] sm:$0xff]
        %v775 = vld [vmem:[#allocation2 + $0x788] sm:$0xff]
        %v776 = vld [vmem:[#allocation2 + $0x790] sm:$0xff]
        %v777 = vld [vmem:[#allocation2 + $0x798] sm:$0xff]
        %v778 = vld [vmem:[#allocation2 + $0x7a0] sm:$0xff]
        %v779 = vld [vmem:[#allocation2 + $0x7a8] sm:$0xff]
        %v780 = vld [vmem:[#allocation2 + $0x7b0] sm:$0xff]
        %v781 = vld [vmem:[#allocation2 + $0x7b8] sm:$0xff]
        %v782 = vld [vmem:[#allocation2 + $0x7c0] sm:$0xff]
        %v783 = vld [vmem:[#allocation2 + $0x7c8] sm:$0xff]
        %v784 = vld [vmem:[#allocation2 + $0x7d0] sm:$0xff]
        %v785 = vld [vmem:[#allocation2 + $0x7d8] sm:$0xff]
        %v786 = vld [vmem:[#allocation2 + $0x7e0] sm:$0xff]
        %v787 = vld [vmem:[#allocation2 + $0x7e8] sm:$0xff]
        %v788 = vld [vmem:[#allocation2 + $0x7f0] sm:$0xff]
        %v789 = vld [vmem:[#allocation2 + $0x7f8] sm:$0xff]
        %790 = vmatprep.subr.mxu0 %v535
        %791 = vmatpush1.msra.mxu0 %v534
        %792 = vmatprep.subr.mxu0 %v543
        %793 = vmatpush1.msra.mxu0 %v542
        %794 = vmatprep.subr.mxu0 %v551
        %795 = vmatpush1.msra.mxu0 %v550
        %796 = vmatprep.subr.mxu0 %v559
        %797 = vmatpush1.msra.mxu0 %v558
        %798 = vmatprep.subr.mxu0 %v567
        %799 = vmatpush1.msra.mxu0 %v566
        %800 = vmatprep.subr.mxu0 %v575
        %801 = vmatpush1.msra.mxu0 %v574
        %802 = vmatprep.subr.mxu0 %v583
        %803 = vmatpush1.msra.mxu0 %v582
        %804 = vmatprep.subr.mxu0 %v591
        %805 = vmatpush1.msra.mxu0 %v590
        %806 = vmatprep.subr.mxu0 %v599
        %807 = vmatpush1.msra.mxu0 %v598
        %808 = vmatprep.subr.mxu0 %v607
        %809 = vmatpush1.msra.mxu0 %v606
        %810 = vmatprep.subr.mxu0 %v615
        %811 = vmatpush1.msra.mxu0 %v614
        %812 = vmatprep.subr.mxu0 %v623
        %813 = vmatpush1.msra.mxu0 %v622
        %814 = vmatprep.subr.mxu0 %v631
        %815 = vmatpush1.msra.mxu0 %v630
        %816 = vmatprep.subr.mxu0 %v639
        %817 = vmatpush1.msra.mxu0 %v638
        %818 = vmatprep.subr.mxu0 %v647
        %819 = vmatpush1.msra.mxu0 %v646
        %820 = vmatprep.subr.mxu0 %v655
        %821 = vmatpush1.msra.mxu0 %v654
        %822 = vmatprep.subr.mxu0 %v663
        %823 = vmatpush1.msra.mxu0 %v662
        %824 = vmatprep.subr.mxu0 %v671
        %825 = vmatpush1.msra.mxu0 %v670
        %826 = vmatprep.subr.mxu0 %v679
        %827 = vmatpush1.msra.mxu0 %v678
        %828 = vmatprep.subr.mxu0 %v687
        %829 = vmatpush1.msra.mxu0 %v686
        %830 = vmatprep.subr.mxu0 %v695
        %831 = vmatpush1.msra.mxu0 %v694
        %832 = vmatprep.subr.mxu0 %v703
        %833 = vmatpush1.msra.mxu0 %v702
        %834 = vmatprep.subr.mxu0 %v711
        %835 = vmatpush1.msra.mxu0 %v710
        %836 = vmatprep.subr.mxu0 %v719
        %837 = vmatpush1.msra.mxu0 %v718
        %838 = vmatprep.subr.mxu0 %v727
        %839 = vmatpush1.msra.mxu0 %v726
        %840 = vmatprep.subr.mxu0 %v735
        %841 = vmatpush1.msra.mxu0 %v734
        %842 = vmatprep.subr.mxu0 %v743
        %843 = vmatpush1.msra.mxu0 %v742
        %844 = vmatprep.subr.mxu0 %v751
        %845 = vmatpush1.msra.mxu0 %v750
        %846 = vmatprep.subr.mxu0 %v759
        %847 = vmatpush1.msra.mxu0 %v758
        %848 = vmatprep.subr.mxu0 %v767
        %849 = vmatpush1.msra.mxu0 %v766
        %850 = vmatprep.subr.mxu0 %v775
        %851 = vmatpush1.msra.mxu0 %v774
        %852 = vmatprep.subr.mxu0 %v783
        %853 = vmatpush1.msra.mxu0 %v782
        %854 = vmatprep.mubr.f32.mxu0 %v533
        %855 = vmatmul.mubr.f32.gmra.mrb[0].mxu0 %v532
        %v856 = vpop.f32.mrb[0].mxu0
        %v857 = vadd.f32 0.0, %v856
        %v858 = vpop.f32.mrb[0].mxu0
        %v859 = vadd.f32 0.0, %v858
        %860 = vdwg.mxu0
        %861 = vmatprep.subr.mxu0 %v537
        %862 = vmatpush1.msra.mxu0 %v536
        %863 = vmatprep.subr.mxu0 %v545
        %864 = vmatpush1.msra.mxu0 %v544
        %865 = vmatprep.subr.mxu0 %v553
        %866 = vmatpush1.msra.mxu0 %v552
        %867 = vmatprep.subr.mxu0 %v561
        %868 = vmatpush1.msra.mxu0 %v560
        %869 = vmatprep.subr.mxu0 %v569
        %870 = vmatpush1.msra.mxu0 %v568
        %871 = vmatprep.subr.mxu0 %v577
        %872 = vmatpush1.msra.mxu0 %v576
        %873 = vmatprep.subr.mxu0 %v585
        %874 = vmatpush1.msra.mxu0 %v584
        %875 = vmatprep.subr.mxu0 %v593
        %876 = vmatpush1.msra.mxu0 %v592
        %877 = vmatprep.subr.mxu0 %v601
        %878 = vmatpush1.msra.mxu0 %v600
        %879 = vmatprep.subr.mxu0 %v609
        %880 = vmatpush1.msra.mxu0 %v608
        %881 = vmatprep.subr.mxu0 %v617
        %882 = vmatpush1.msra.mxu0 %v616
        %883 = vmatprep.subr.mxu0 %v625
        %884 = vmatpush1.msra.mxu0 %v624
        %885 = vmatprep.subr.mxu0 %v633
        %886 = vmatpush1.msra.mxu0 %v632
        %887 = vmatprep.subr.mxu0 %v641
        %888 = vmatpush1.msra.mxu0 %v640
        %889 = vmatprep.subr.mxu0 %v649
        %890 = vmatpush1.msra.mxu0 %v648
        %891 = vmatprep.subr.mxu0 %v657
        %892 = vmatpush1.msra.mxu0 %v656
        %893 = vmatprep.subr.mxu0 %v665
        %894 = vmatpush1.msra.mxu0 %v664
        %895 = vmatprep.subr.mxu0 %v673
        %896 = vmatpush1.msra.mxu0 %v672
        %897 = vmatprep.subr.mxu0 %v681
        %898 = vmatpush1.msra.mxu0 %v680
        %899 = vmatprep.subr.mxu0 %v689
        %900 = vmatpush1.msra.mxu0 %v688
        %901 = vmatprep.subr.mxu0 %v697
        %902 = vmatpush1.msra.mxu0 %v696
        %903 = vmatprep.subr.mxu0 %v705
        %904 = vmatpush1.msra.mxu0 %v704
        %905 = vmatprep.subr.mxu0 %v713
        %906 = vmatpush1.msra.mxu0 %v712
        %907 = vmatprep.subr.mxu0 %v721
        %908 = vmatpush1.msra.mxu0 %v720
        %909 = vmatprep.subr.mxu0 %v729
        %910 = vmatpush1.msra.mxu0 %v728
        %911 = vmatprep.subr.mxu0 %v737
        %912 = vmatpush1.msra.mxu0 %v736
        %913 = vmatprep.subr.mxu0 %v745
        %914 = vmatpush1.msra.mxu0 %v744
        %915 = vmatprep.subr.mxu0 %v753
        %916 = vmatpush1.msra.mxu0 %v752
        %917 = vmatprep.subr.mxu0 %v761
        %918 = vmatpush1.msra.mxu0 %v760
        %919 = vmatprep.subr.mxu0 %v769
        %920 = vmatpush1.msra.mxu0 %v768
        %921 = vmatprep.subr.mxu0 %v777
        %922 = vmatpush1.msra.mxu0 %v776
        %923 = vmatprep.subr.mxu0 %v785
        %924 = vmatpush1.msra.mxu0 %v784
        %925 = vmatprep.mubr.f32.mxu0 %v533
        %926 = vmatmul.mubr.f32.gmra.mrb[0].mxu0 %v532
        %v927 = vpop.f32.mrb[0].mxu0
        %v928 = vadd.f32 0.0, %v927
        %v929 = vpop.f32.mrb[0].mxu0
        %v930 = vadd.f32 0.0, %v929
        %931 = vdwg.mxu0
        %932 = vmatprep.subr.mxu0 %v539
        %933 = vmatpush1.msra.mxu0 %v538
        %934 = vmatprep.subr.mxu0 %v547
        %935 = vmatpush1.msra.mxu0 %v546
        %936 = vmatprep.subr.mxu0 %v555
        %937 = vmatpush1.msra.mxu0 %v554
        %938 = vmatprep.subr.mxu0 %v563
        %939 = vmatpush1.msra.mxu0 %v562
        %940 = vmatprep.subr.mxu0 %v571
        %941 = vmatpush1.msra.mxu0 %v570
        %942 = vmatprep.subr.mxu0 %v579
        %943 = vmatpush1.msra.mxu0 %v578
        %944 = vmatprep.subr.mxu0 %v587
        %945 = vmatpush1.msra.mxu0 %v586
        %946 = vmatprep.subr.mxu0 %v595
        %947 = vmatpush1.msra.mxu0 %v594
        %948 = vmatprep.subr.mxu0 %v603
        %949 = vmatpush1.msra.mxu0 %v602
        %950 = vmatprep.subr.mxu0 %v611
        %951 = vmatpush1.msra.mxu0 %v610
        %952 = vmatprep.subr.mxu0 %v619
        %953 = vmatpush1.msra.mxu0 %v618
        %954 = vmatprep.subr.mxu0 %v627
        %955 = vmatpush1.msra.mxu0 %v626
        %956 = vmatprep.subr.mxu0 %v635
        %957 = vmatpush1.msra.mxu0 %v634
        %958 = vmatprep.subr.mxu0 %v643
        %959 = vmatpush1.msra.mxu0 %v642
        %960 = vmatprep.subr.mxu0 %v651
        %961 = vmatpush1.msra.mxu0 %v650
        %962 = vmatprep.subr.mxu0 %v659
        %963 = vmatpush1.msra.mxu0 %v658
        %964 = vmatprep.subr.mxu0 %v667
        %965 = vmatpush1.msra.mxu0 %v666
        %966 = vmatprep.subr.mxu0 %v675
        %967 = vmatpush1.msra.mxu0 %v674
        %968 = vmatprep.subr.mxu0 %v683
        %969 = vmatpush1.msra.mxu0 %v682
        %970 = vmatprep.subr.mxu0 %v691
        %971 = vmatpush1.msra.mxu0 %v690
        %972 = vmatprep.subr.mxu0 %v699
        %973 = vmatpush1.msra.mxu0 %v698
        %974 = vmatprep.subr.mxu0 %v707
        %975 = vmatpush1.msra.mxu0 %v706
        %976 = vmatprep.subr.mxu0 %v715
        %977 = vmatpush1.msra.mxu0 %v714
        %978 = vmatprep.subr.mxu0 %v723
        %979 = vmatpush1.msra.mxu0 %v722
        %980 = vmatprep.subr.mxu0 %v731
        %981 = vmatpush1.msra.mxu0 %v730
        %982 = vmatprep.subr.mxu0 %v739
        %983 = vmatpush1.msra.mxu0 %v738
        %984 = vmatprep.subr.mxu0 %v747
        %985 = vmatpush1.msra.mxu0 %v746
        %986 = vmatprep.subr.mxu0 %v755
        %987 = vmatpush1.msra.mxu0 %v754
        %988 = vmatprep.subr.mxu0 %v763
        %989 = vmatpush1.msra.mxu0 %v762
        %990 = vmatprep.subr.mxu0 %v771
        %991 = vmatpush1.msra.mxu0 %v770
        %992 = vmatprep.subr.mxu0 %v779
        %993 = vmatpush1.msra.mxu0 %v778
        %994 = vmatprep.subr.mxu0 %v787
        %995 = vmatpush1.msra.mxu0 %v786
        %996 = vmatprep.mubr.f32.mxu0 %v533
        %997 = vmatmul.mubr.f32.gmra.mrb[0].mxu0 %v532
        %v998 = vpop.f32.mrb[0].mxu0
        %v999 = vadd.f32 0.0, %v998
        %v1000 = vpop.f32.mrb[0].mxu0
        %v1001 = vadd.f32 0.0, %v1000
        %1002 = vdwg.mxu0
        %1003 = vmatprep.subr.mxu0 %v541
        %1004 = vmatpush1.msra.mxu0 %v540
        %1005 = vmatprep.subr.mxu0 %v549
        %1006 = vmatpush1.msra.mxu0 %v548
        %1007 = vmatprep.subr.mxu0 %v557
        %1008 = vmatpush1.msra.mxu0 %v556
        %1009 = vmatprep.subr.mxu0 %v565
        %1010 = vmatpush1.msra.mxu0 %v564
        %1011 = vmatprep.subr.mxu0 %v573
        %1012 = vmatpush1.msra.mxu0 %v572
        %1013 = vmatprep.subr.mxu0 %v581
        %1014 = vmatpush1.msra.mxu0 %v580
        %1015 = vmatprep.subr.mxu0 %v589
        %1016 = vmatpush1.msra.mxu0 %v588
        %1017 = vmatprep.subr.mxu0 %v597
        %1018 = vmatpush1.msra.mxu0 %v596
        %1019 = vmatprep.subr.mxu0 %v605
        %1020 = vmatpush1.msra.mxu0 %v604
        %1021 = vmatprep.subr.mxu0 %v613
        %1022 = vmatpush1.msra.mxu0 %v612
        %1023 = vmatprep.subr.mxu0 %v621
        %1024 = vmatpush1.msra.mxu0 %v620
        %1025 = vmatprep.subr.mxu0 %v629
        %1026 = vmatpush1.msra.mxu0 %v628
        %1027 = vmatprep.subr.mxu0 %v637
        %1028 = vmatpush1.msra.mxu0 %v636
        %1029 = vmatprep.subr.mxu0 %v645
        %1030 = vmatpush1.msra.mxu0 %v644
        %1031 = vmatprep.subr.mxu0 %v653
        %1032 = vmatpush1.msra.mxu0 %v652
        %1033 = vmatprep.subr.mxu0 %v661
        %1034 = vmatpush1.msra.mxu0 %v660
        %1035 = vmatprep.subr.mxu0 %v669
        %1036 = vmatpush1.msra.mxu0 %v668
        %1037 = vmatprep.subr.mxu0 %v677
        %1038 = vmatpush1.msra.mxu0 %v676
        %1039 = vmatprep.subr.mxu0 %v685
        %1040 = vmatpush1.msra.mxu0 %v684
        %1041 = vmatprep.subr.mxu0 %v693
        %1042 = vmatpush1.msra.mxu0 %v692
        %1043 = vmatprep.subr.mxu0 %v701
        %1044 = vmatpush1.msra.mxu0 %v700
        %1045 = vmatprep.subr.mxu0 %v709
        %1046 = vmatpush1.msra.mxu0 %v708
        %1047 = vmatprep.subr.mxu0 %v717
        %1048 = vmatpush1.msra.mxu0 %v716
        %1049 = vmatprep.subr.mxu0 %v725
        %1050 = vmatpush1.msra.mxu0 %v724
        %1051 = vmatprep.subr.mxu0 %v733
        %1052 = vmatpush1.msra.mxu0 %v732
        %1053 = vmatprep.subr.mxu0 %v741
        %1054 = vmatpush1.msra.mxu0 %v740
        %1055 = vmatprep.subr.mxu0 %v749
        %1056 = vmatpush1.msra.mxu0 %v748
        %1057 = vmatprep.subr.mxu0 %v757
        %1058 = vmatpush1.msra.mxu0 %v756
        %1059 = vmatprep.subr.mxu0 %v765
        %1060 = vmatpush1.msra.mxu0 %v764
        %1061 = vmatprep.subr.mxu0 %v773
        %1062 = vmatpush1.msra.mxu0 %v772
        %1063 = vmatprep.subr.mxu0 %v781
        %1064 = vmatpush1.msra.mxu0 %v780
        %1065 = vmatprep.subr.mxu0 %v789
        %1066 = vmatpush1.msra.mxu0 %v788
        %1067 = vmatprep.mubr.f32.mxu0 %v533
        %1068 = vmatmul.mubr.f32.gmra.mrb[0].mxu0 %v532
        %v1069 = vpop.f32.mrb[0].mxu0
        %v1070 = vadd.f32 0.0, %v1069
        %v1071 = vpop.f32.mrb[0].mxu0
        %v1072 = vadd.f32 0.0, %v1071
        %1073 = vdwg.mxu0
        %1074 = vst [vmem:[%s359] sm:$0xff] %v857
        %1075 = vst [vmem:[%s359 + $0x8] sm:$0xff] %v859
        %1076 = vst [vmem:[%s359 + $0x10] sm:$0xff] %v928
        %1077 = vst [vmem:[%s359 + $0x18] sm:$0xff] %v930
        %1078 = vst [vmem:[%s359 + $0x20] sm:$0xff] %v999
        %1079 = vst [vmem:[%s359 + $0x28] sm:$0xff] %v1001
        %1080 = vst [vmem:[%s359 + $0x30] sm:$0xff] %v1070
        %1081 = vst [vmem:[%s359 + $0x38] sm:$0xff] %v1072
        %p1082 = scmp.lt.s32.totalorder %s22, 1
        %s1083 = scalar_select %p1082, %s22, 1
        %p1084 = scmp.lt.s32.totalorder %s23, 0
        %s1085 = scalar_select %p1084, %s23, 0
        %s1086 = smul.addr %s1085, 8
        %s1087 = smul.addr %s1083, 8
        %s1088 = sadd.s32 %s1086, %s1087
        %s1089 = smul.addr %s1088, 8
        %s1090 = scalar_lea.vmem %s6, %s1089
        // Predicated region
        $region49: #{feature_pyramid.1} parent=43 // pred_check
          %p1091 = pneg %p201
        $region50: #{feature_pyramid.1} parent=43 // pred_check_branch
          %1093 = sbr.rel (%p1091) target = $region52
        $region51: #{feature_pyramid.1} parent=43 // pred_region
          _
        $region52: #{feature_pyramid.1} parent=43 // pred_fallthru
          _
      $region44: #{feature_pyramid.1} parent=5 // pred_fallthru
        _
      %p1094 = scmp.le.s32.totalorder 2, %s13
      // Predicated region
      $region53: #{feature_pyramid.1} parent=5 // pred_check
        %p1095 = pneg %p1094
      $region54: #{feature_pyramid.1} parent=5 // pred_check_branch
        %1097 = sbr.rel (%p1095) target = $region56
      $region55: #{feature_pyramid.1} parent=5 // pred_region
        %s1098 = ssub.s32 %s13, 2
        // Predicated region
        $region57: #{feature_pyramid.1} parent=55 // pred_check
          %p1099 = pneg %p207
        $region58: #{feature_pyramid.1} parent=55 // pred_check_branch
          %1101 = sbr.rel (%p1099) target = $region60
        $region59: #{feature_pyramid.1} parent=55 // pred_region
          %p1102 = scmp.lt.s32.totalorder %s24, 1
          %s1103 = scalar_select %p1102, %s24, 1
          %p1104 = scmp.lt.s32.totalorder %s25, 0
          %s1105 = scalar_select %p1104, %s25, 0
          %s1106 = smul.addr %s1105, 8
          %s1107 = smul.addr %s1103, 8
          %s1108 = sadd.s32 %s1106, %s1107
          %s1109 = smul.addr %s1108, 8
          %s1110 = scalar_lea.vmem %s6, %s1109
        $region60: #{feature_pyramid.1} parent=55 // pred_fallthru
          _
      $region56: #{feature_pyramid.1} parent=5 // pred_fallthru
        _
    $region6: #{feature_pyramid.1} parent=1 // loop_footer
      %s17 = sadd.s32 1, %s13
    $region7: #{feature_pyramid.1} parent=1 // loop_footer_branch
      %12 = sbr.rel target = $region3
    $region8: #{feature_pyramid.1} parent=1 // loop_exit
      _
    %1111 = vsyncpa [#allocation3], 1
    %s1112 = scalar_lea.sflag [#allocation3], 1
    %1113 = vsyncpa %s1112, 1

</llo_original>
